<compile_context>
chip_gen: v6e
topology: v6e:2x2x1
jax: 0.10.0
libtpu: 0.0.40
codegen_flags: <defaults>
</compile_context>

<pallas_src>
import functools

import jax
import jax.numpy as jnp
from jax.experimental import pallas as pl
from jax.experimental.pallas import tpu as pltpu

EPS = 1e-5

# 3x3 tap offsets (dy, dx); k = (dy+1)*3 + (dx+1) == kh*3 + kw matches the
# packed weight column order (kh*3 + kw)*Cp + c_in.
_OFFSETS = tuple((dy, dx) for dy in (-1, 0, 1) for dx in (-1, 0, 1))


def _round_up(x, m):
    return (x + m - 1) // m * m


@functools.lru_cache(maxsize=None)
def _roll_sign():
    """Resolve pltpu.roll's rotation direction once with a tiny probe kernel.

    Returns sign s so that pltpu.roll(x, shift=(s*d) % n, axis=-1)[..., p]
    equals x[..., (p + d) % n].  Falls back to the np.roll convention (-1) if
    the probe cannot run (AOT / CPU-only tracing flows).
    """
    def kernel(x_ref, o_ref):
        o_ref[...] = pltpu.roll(x_ref[...], shift=1, axis=1)

    try:
        x = jnp.tile(jnp.arange(128, dtype=jnp.int32)[None, :], (8, 1))
        y = pl.pallas_call(
            kernel, out_shape=jax.ShapeDtypeStruct((8, 128), jnp.int32))(x)
        return -1 if int(y[0, 0]) == 127 else 1
    except Exception:
        # TODO(synk): probe needs a device; assume np.roll convention here.
        return -1


def resblocks_kernel(x_ref, w_ref, mask_ref, out_ref, acc_ref, *,
                     H, W, roll_sign, fused_im2col, bf16_patches):
    """One grid step = one ResBlock (conv+IN+ReLU, conv+IN, residual) on one image.

    x_ref:    (1, Cp, HW)       f32   input image (block index depends on n only)
    w_ref:    (1, 2, Cp, 9*Cp)  bf16  this block's two packed conv weights
    mask_ref: (9, 1, HW)        f32/bf16 border masks (realise ZeroPad2d(1))
    out_ref:  (1, C, HW)              written at the last block only
    acc_ref:  (Cp, HW)          f32   activation carried across the block axis
    """
    Cp = x_ref.shape[1]
    C = out_ref.shape[1]
    HW = H * W
    inv_hw = 1.0 / HW
    blk = pl.program_id(1)

    patch_dt = jnp.bfloat16 if bf16_patches else jnp.float32

    # Hoist the nine mask rows when they comfortably fit in vregs; otherwise
    # re-slice per tap (JAX does not CSE broadcast_in_dim).
    hoist_masks = HW <= 2048
    mask_rows = [mask_ref[k] for k in range(9)] if hoist_masks else None

    def shifted(xp, k, dy, dx):
        # y[c, h*W + w] = xp[c, (h+dy)*W + (w+dx)], 0 outside the image
        # (ZeroPad2d(1) as a flat lane roll + 0/1 border mask).
        d = dy * W + dx
        if d == 0:
            return xp
        y = pltpu.roll(xp, shift=(roll_sign * d) % HW, axis=1)
        m = mask_rows[k] if hoist_masks else mask_ref[k]
        return y * m

    def conv3x3_instnorm(x_f32, w_mat):
        xp = x_f32.astype(patch_dt)
        if fused_im2col:
            # im2col patch matrix (9*Cp, HW) -> ONE MXU matmul (bf16 operands,
            # f32 accumulation).  Used when Cp < 128 (K = 9*Cp fills the MXU).
            views = [shifted(xp, k, dy, dx)
                     for k, (dy, dx) in enumerate(_OFFSETS)]
            patches = jnp.concatenate(views, axis=0).astype(jnp.bfloat16)
            acc = jnp.dot(w_mat, patches, preferred_element_type=jnp.float32)
        else:
            # 9-tap accumulation (Cp >= 128): no (9Cp, HW) concat buffer.
            acc = jnp.zeros((Cp, HW), jnp.float32)
            for k, (dy, dx) in enumerate(_OFFSETS):
                v = shifted(xp, k, dy, dx).astype(jnp.bfloat16)
                acc = acc + jnp.dot(w_mat[:, k * Cp:(k + 1) * Cp], v,
                                    preferred_element_type=jnp.float32)
        # InstanceNorm2d(affine=False): one pass (sum + sum of squares),
        # biased variance, eps inside rsqrt.  The conv bias is omitted on
        # purpose: it is exactly cancelled by the mean subtraction.
        mean = jnp.sum(acc, axis=1, keepdims=True) * inv_hw
        var = jnp.sum(acc * acc, axis=1, keepdims=True) * inv_hw - mean * mean
        return (acc - mean) * jax.lax.rsqrt(var + EPS)

    @pl.when(blk == 0)
    def _():
        acc_ref[...] = x_ref[0].astype(jnp.float32)

    x = acc_ref[...]
    y = jnp.maximum(conv3x3_instnorm(x, w_ref[0, 0]), 0.0)   # conv + IN + ReLU
    z = conv3x3_instnorm(y, w_ref[0, 1])                     # conv + IN
    acc_ref[...] = x + z                                     # residual add

    @pl.when(blk == pl.num_programs(1) - 1)
    def _():
        out_ref[0] = acc_ref[:C, :].astype(out_ref.dtype)    # lane-dense store


def pack_resblock_params(block_params):
    """Pack PyTorch-layout conv weights (OIHW) into the stacked kernel layout
    (nb, 2, Cp, 9*Cp) bf16 with Cp = C rounded up to a multiple of 8 and
    im2col column order (kh*3 + kw)*Cp + c_in.  Conv biases are NOT packed:
    under InstanceNorm2d(affine=False) a per-channel bias is a mathematical
    no-op (mean shifts by the bias, variance unchanged)."""
    C = block_params[0]["w1"].shape[0]
    Cp = _round_up(C, 8)
    w_blocks = []
    for p in block_params:
        ws = []
        for wk in ("w1", "w2"):
            w = jnp.asarray(p[wk], jnp.float32)                  # (C, C, 3, 3)
            w = jnp.pad(w, ((0, Cp - C), (0, Cp - C), (0, 0), (0, 0)))
            ws.append(jnp.transpose(w, (0, 2, 3, 1)).reshape(Cp, 9 * Cp))
        w_blocks.append(jnp.stack(ws))
    return jnp.stack(w_blocks).astype(jnp.bfloat16)              # (nb,2,Cp,9Cp)


def _build_border_masks(H, W, dtype):
    """(9, 1, H*W) 0/1 masks zeroing positions where a rolled view wrapped the
    image border (this realises ZeroPad2d(1))."""
    r = jnp.arange(H * W, dtype=jnp.int32) // W
    c = jnp.arange(H * W, dtype=jnp.int32) % W
    masks = []
    for dy, dx in _OFFSETS:
        ok = jnp.ones((H * W,), dtype=bool)
        if dy == -1:
            ok &= r >= 1
        elif dy == 1:
            ok &= r <= H - 2
        if dx == -1:
            ok &= c >= 1
        elif dx == 1:
            ok &= c <= W - 2
        masks.append(ok)
    return jnp.stack(masks).astype(dtype).reshape(9, 1, H * W)


def _const_input_spec(shape, index_map):
    """BlockSpec for a grid-invariant input: one VMEM buffer is enough (the
    default double-buffer wastes VMEM, material on v7x's 64 MiB)."""
    try:
        return pl.BlockSpec(shape, index_map, pipeline_mode=pl.Buffered(1))
    except (AttributeError, TypeError):   # older BlockSpec signature
        return pl.BlockSpec(shape, index_map)


def resblocks_forward(x_nchw, w_all, *, bf16_patches=None, fused_im2col=None):
    """ResBlocks.forward.  x_nchw: (N, C, H, W) f32; w_all from pack_resblock_params."""
    N, C, H, W = x_nchw.shape
    nb, _, Cp, _ = w_all.shape
    HW = H * W

    if bf16_patches is None:
        # Build roll/mask/concat directly in bf16 only when Cp is a multiple of
        # the native bf16 sublane tile (16); otherwise keep the elementwise
        # build in f32 (also the v5e preference) and cast only MXU operands.
        bf16_patches = (Cp % 16 == 0)
    if fused_im2col is None:
        # Fused single matmul for small Cp; 9-tap accumulation once Cp alone
        # fills the MXU (>=128), which drops the (9Cp,HW) concat buffer.
        fused_im2col = Cp < 128

    x = x_nchw.reshape(N, C, HW)            # NCHW -> (N, C, H*W): reshape only
    if Cp != C:
        x = jnp.pad(x, ((0, 0), (0, Cp - C), (0, 0)))
    masks = _build_border_masks(
        H, W, jnp.bfloat16 if bf16_patches else jnp.float32)

    kernel = functools.partial(
        resblocks_kernel, H=H, W=W, roll_sign=_roll_sign(),
        fused_im2col=fused_im2col, bf16_patches=bf16_patches)

    flops = 2 * N * nb * 2 * Cp * (9 * Cp) * HW               # matmuls only
    bytes_accessed = (x.size * 4 + w_all.size * 2
                      + masks.size * masks.dtype.itemsize
                      + N * C * HW * x_nchw.dtype.itemsize)

    out = pl.pallas_call(
        kernel,
        out_shape=jax.ShapeDtypeStruct((N, C, HW), x_nchw.dtype),
        grid_spec=pltpu.PrefetchScalarGridSpec(
            num_scalar_prefetch=0,
            # Outer axis: one image per step ('parallel' -> megacore / 2 TCs
            # when N > 1).  Inner axis: one ResBlock per step — its weights
            # are streamed (double-buffered) while the activation stays
            # resident in the f32 VMEM scratch accumulator.
            grid=(N, nb),
            in_specs=[
                pl.BlockSpec((1, Cp, HW), lambda n, b: (n, 0, 0)),
                pl.BlockSpec((1, 2, Cp, 9 * Cp), lambda n, b: (b, 0, 0, 0)),
                _const_input_spec((9, 1, HW), lambda n, b: (0, 0, 0)),
            ],
            out_specs=pl.BlockSpec((1, C, HW), lambda n, b: (n, 0, 0)),
            scratch_shapes=[pltpu.VMEM((Cp, HW), jnp.float32)],
        ),
        compiler_params=pltpu.CompilerParams(
            dimension_semantics=("parallel", "arbitrary"),
            # Fits v7x's 64 MiB physical VMEM with headroom; plenty on
            # v5e/v6e (128 MiB physical).
            vmem_limit_bytes=48 * 1024 * 1024,
        ),
        cost_estimate=pl.CostEstimate(
            flops=flops, transcendentals=N * nb * 2 * Cp,
            bytes_accessed=bytes_accessed),
    )(x, w_all, masks)
    # TODO(synk): for N == 1 on v7x (2 TensorCores) add a second 'parallel'
    # axis by splitting H into halo'd strips so both cores are busy.
    return out.reshape(N, C, H, W)


# ----------------------------- reference (pure JAX) --------------------------
def _ref_conv_in(x, w_oihw, b, relu):
    y = jax.lax.conv_general_dilated(
        x, w_oihw, (1, 1), [(1, 1), (1, 1)],
        dimension_numbers=("NCHW", "OIHW", "NCHW"),
        precision=jax.lax.Precision.HIGHEST) + b[None, :, None, None]
    mean = jnp.mean(y, axis=(2, 3), keepdims=True)
    var = jnp.mean((y - mean) ** 2, axis=(2, 3), keepdims=True)
    y = (y - mean) * jax.lax.rsqrt(var + EPS)
    return jnp.maximum(y, 0.0) if relu else y


def ref_resblocks(x_nchw, torch_params):
    out = x_nchw
    for p in torch_params:
        y = _ref_conv_in(out, p["w1"], p["b1"], relu=True)
        z = _ref_conv_in(y, p["w2"], p["b2"], relu=False)
        out = out + z
    return out


# ----------------------------------- main ------------------------------------
if __name__ == "__main__":
    num_blocks, N, C, H, W = 2, 2, 4, 16, 16

    key = jax.random.PRNGKey(0)
    key, kx = jax.random.split(key)
    x = jax.random.normal(kx, (N, C, H, W), jnp.float32)

    torch_params = []   # PyTorch layout (OIHW weights, (C,) biases)
    for _ in range(num_blocks):
        key, k1, k2, k3, k4 = jax.random.split(key, 5)
        torch_params.append({
            "w1": 0.1 * jax.random.normal(k1, (C, C, 3, 3), jnp.float32),
            "b1": 0.1 * jax.random.normal(k2, (C,), jnp.float32),
            "w2": 0.1 * jax.random.normal(k3, (C, C, 3, 3), jnp.float32),
            "b2": 0.1 * jax.random.normal(k4, (C,), jnp.float32),
        })

    w_all = pack_resblock_params(torch_params)   # biases intentionally dropped

    out = jax.block_until_ready(resblocks_forward(x, w_all))
    ref = jax.block_until_ready(ref_resblocks(x, torch_params))

    assert out.shape == (N, C, H, W)
    # The reference keeps the conv bias (a no-op under InstanceNorm) and runs
    # f32 Precision.HIGHEST; the kernel feeds the MXU bf16 operands with f32
    # accumulation, giving ~2.5e-2 max-abs discrepancy at these magnitudes.
    # Tolerance below is the bf16-operand error budget (re-validate at
    # production C/HW before shipping; C=4 conclusions do not transfer).
    err = float(jnp.max(jnp.abs(out - ref)))
    assert jnp.allclose(out, ref, atol=6e-2, rtol=6e-2), err
    print("KERNEL_OK")
</pallas_src>

<mosaic_0001>
module attributes {stable_mosaic.version = 11 : i64} {
  func.func @kernel(%arg0: memref<8x128xi32, #tpu.memory_space<vmem>>, %arg1: memref<8x128xi32, #tpu.memory_space<vmem>>) attributes {dimension_semantics = [], scalar_prefetch = 0 : i64, scratch_operands = 0 : i64, tpu.core_type = #tpu.core_type<tc>} {
    %c0 = arith.constant 0 : index
    %c0_0 = arith.constant 0 : index
    %0 = vector.load %arg0[%c0, %c0_0] : memref<8x128xi32, #tpu.memory_space<vmem>>, vector<8x128xi32>
    %c1_i32 = arith.constant 1 : i32
    %1 = tpu.dynamic_rotate %0 by %c1_i32 dim 1 : vector<8x128xi32>, i32 -> vector<8x128xi32>
    %c0_1 = arith.constant 0 : index
    %c0_2 = arith.constant 0 : index
    %2 = vector.load %arg1[%c0_1, %c0_2] : memref<8x128xi32, #tpu.memory_space<vmem>>, vector<8x128xi32>
    tpu.vector_store %arg1[%c0_1, %c0_2], %1 {strides = array<i32>} : memref<8x128xi32, #tpu.memory_space<vmem>>, vector<8x128xi32>,
    return
  }
}

module attributes {stable_mosaic.version = 11 : i64} {
  func.func @resblocks_kernel(%arg0: i32, %arg1: i32, %arg2: memref<1x8x256xf32, #tpu.memory_space<vmem>>, %arg3: memref<1x2x8x72xbf16, #tpu.memory_space<vmem>>, %arg4: memref<9x1x256xf32, #tpu.memory_space<vmem>>, %arg5: memref<1x4x256xf32, #tpu.memory_space<vmem>>, %arg6: memref<8x256xf32, #tpu.memory_space<vmem>>) attributes {dimension_semantics = [#tpu.dimension_semantics<parallel>, #tpu.dimension_semantics<arbitrary>], iteration_bounds = array<i64: 2, 2>, scalar_prefetch = 0 : i64, scratch_operands = 1 : i64, tpu.core_type = #tpu.core_type<tc>, window_params = [{transform_indices = @transform_0, window_bounds = array<i64: 1, 8, 256>}, {transform_indices = @transform_1, window_bounds = array<i64: 1, 2, 8, 72>}, {pipeline_mode = #tpu.pipeline_mode<synchronous>, transform_indices = @transform_2, window_bounds = array<i64: 9, 1, 256>}, {transform_indices = @transform_3, window_bounds = array<i64: 1, 4, 256>}]} {
    %c0 = arith.constant 0 : index
    %c0_0 = arith.constant 0 : index
    %c0_1 = arith.constant 0 : index
    %0 = vector.load %arg4[%c0, %c0_0, %c0_1] : memref<9x1x256xf32, #tpu.memory_space<vmem>>, vector<1x1x256xf32>
    %1 = vector.shape_cast %0 : vector<1x1x256xf32> to vector<1x256xf32>
    %c1 = arith.constant 1 : index
    %c0_2 = arith.constant 0 : index
    %c0_3 = arith.constant 0 : index
    %2 = vector.load %arg4[%c1, %c0_2, %c0_3] : memref<9x1x256xf32, #tpu.memory_space<vmem>>, vector<1x1x256xf32>
    %3 = vector.shape_cast %2 : vector<1x1x256xf32> to vector<1x256xf32>
    %c2 = arith.constant 2 : index
    %c0_4 = arith.constant 0 : index
    %c0_5 = arith.constant 0 : index
    %4 = vector.load %arg4[%c2, %c0_4, %c0_5] : memref<9x1x256xf32, #tpu.memory_space<vmem>>, vector<1x1x256xf32>
    %5 = vector.shape_cast %4 : vector<1x1x256xf32> to vector<1x256xf32>
    %c3 = arith.constant 3 : index
    %c0_6 = arith.constant 0 : index
    %c0_7 = arith.constant 0 : index
    %6 = vector.load %arg4[%c3, %c0_6, %c0_7] : memref<9x1x256xf32, #tpu.memory_space<vmem>>, vector<1x1x256xf32>
    %7 = vector.shape_cast %6 : vector<1x1x256xf32> to vector<1x256xf32>
    %c5 = arith.constant 5 : index
    %c0_8 = arith.constant 0 : index
    %c0_9 = arith.constant 0 : index
    %8 = vector.load %arg4[%c5, %c0_8, %c0_9] : memref<9x1x256xf32, #tpu.memory_space<vmem>>, vector<1x1x256xf32>
    %9 = vector.shape_cast %8 : vector<1x1x256xf32> to vector<1x256xf32>
    %c6 = arith.constant 6 : index
    %c0_10 = arith.constant 0 : index
    %c0_11 = arith.constant 0 : index
    %10 = vector.load %arg4[%c6, %c0_10, %c0_11] : memref<9x1x256xf32, #tpu.memory_space<vmem>>, vector<1x1x256xf32>
    %11 = vector.shape_cast %10 : vector<1x1x256xf32> to vector<1x256xf32>
    %c7 = arith.constant 7 : index
    %c0_12 = arith.constant 0 : index
    %c0_13 = arith.constant 0 : index
    %12 = vector.load %arg4[%c7, %c0_12, %c0_13] : memref<9x1x256xf32, #tpu.memory_space<vmem>>, vector<1x1x256xf32>
    %13 = vector.shape_cast %12 : vector<1x1x256xf32> to vector<1x256xf32>
    %c8 = arith.constant 8 : index
    %c0_14 = arith.constant 0 : index
    %c0_15 = arith.constant 0 : index
    %14 = vector.load %arg4[%c8, %c0_14, %c0_15] : memref<9x1x256xf32, #tpu.memory_space<vmem>>, vector<1x1x256xf32>
    %15 = vector.shape_cast %14 : vector<1x1x256xf32> to vector<1x256xf32>
    %c0_i32 = arith.constant 0 : i32
    %16 = arith.cmpi eq, %arg1, %c0_i32 : i32
    %17 = arith.extui %16 : i1 to i32
    %c0_i32_16 = arith.constant 0 : i32
    %18 = arith.cmpi ne, %17, %c0_i32_16 : i32
    scf.if %18 {
      %c0_51 = arith.constant 0 : index
      %c0_52 = arith.constant 0 : index
      %c0_53 = arith.constant 0 : index
      %121 = vector.load %arg2[%c0_51, %c0_52, %c0_53] : memref<1x8x256xf32, #tpu.memory_space<vmem>>, vector<1x8x256xf32>
      %122 = vector.shape_cast %121 : vector<1x8x256xf32> to vector<8x256xf32>
      %c0_54 = arith.constant 0 : index
      %c0_55 = arith.constant 0 : index
      %123 = vector.load %arg6[%c0_54, %c0_55] : memref<8x256xf32, #tpu.memory_space<vmem>>, vector<8x256xf32>
      tpu.vector_store %arg6[%c0_54, %c0_55], %122 {strides = array<i32>} : memref<8x256xf32, #tpu.memory_space<vmem>>, vector<8x256xf32>,
    } else {
    }
    %c0_17 = arith.constant 0 : index
    %c0_18 = arith.constant 0 : index
    %19 = vector.load %arg6[%c0_17, %c0_18] : memref<8x256xf32, #tpu.memory_space<vmem>>, vector<8x256xf32>
    %c0_19 = arith.constant 0 : index
    %c0_20 = arith.constant 0 : index
    %c0_21 = arith.constant 0 : index
    %c0_22 = arith.constant 0 : index
    %20 = vector.load %arg3[%c0_19, %c0_20, %c0_21, %c0_22] : memref<1x2x8x72xbf16, #tpu.memory_space<vmem>>, vector<1x1x8x72xbf16>
    %21 = vector.shape_cast %20 : vector<1x1x8x72xbf16> to vector<8x72xbf16>
    %c17_i32 = arith.constant 17 : i32
    %22 = tpu.dynamic_rotate %19 by %c17_i32 dim 1 : vector<8x256xf32>, i32 -> vector<8x256xf32>
    %23 = vector.broadcast %1 : vector<1x256xf32> to vector<8x256xf32>
    %24 = arith.mulf %22, %23 : vector<8x256xf32>
    %c16_i32 = arith.constant 16 : i32
    %25 = tpu.dynamic_rotate %19 by %c16_i32 dim 1 : vector<8x256xf32>, i32 -> vector<8x256xf32>
    %26 = vector.broadcast %3 : vector<1x256xf32> to vector<8x256xf32>
    %27 = arith.mulf %25, %26 : vector<8x256xf32>
    %c15_i32 = arith.constant 15 : i32
    %28 = tpu.dynamic_rotate %19 by %c15_i32 dim 1 : vector<8x256xf32>, i32 -> vector<8x256xf32>
    %29 = vector.broadcast %5 : vector<1x256xf32> to vector<8x256xf32>
    %30 = arith.mulf %28, %29 : vector<8x256xf32>
    %c1_i32 = arith.constant 1 : i32
    %31 = tpu.dynamic_rotate %19 by %c1_i32 dim 1 : vector<8x256xf32>, i32 -> vector<8x256xf32>
    %32 = vector.broadcast %7 : vector<1x256xf32> to vector<8x256xf32>
    %33 = arith.mulf %31, %32 : vector<8x256xf32>
    %c255_i32 = arith.constant 255 : i32
    %34 = tpu.dynamic_rotate %19 by %c255_i32 dim 1 : vector<8x256xf32>, i32 -> vector<8x256xf32>
    %35 = vector.broadcast %9 : vector<1x256xf32> to vector<8x256xf32>
    %36 = arith.mulf %34, %35 : vector<8x256xf32>
    %c241_i32 = arith.constant 241 : i32
    %37 = tpu.dynamic_rotate %19 by %c241_i32 dim 1 : vector<8x256xf32>, i32 -> vector<8x256xf32>
    %38 = vector.broadcast %11 : vector<1x256xf32> to vector<8x256xf32>
    %39 = arith.mulf %37, %38 : vector<8x256xf32>
    %c240_i32 = arith.constant 240 : i32
    %40 = tpu.dynamic_rotate %19 by %c240_i32 dim 1 : vector<8x256xf32>, i32 -> vector<8x256xf32>
    %41 = vector.broadcast %13 : vector<1x256xf32> to vector<8x256xf32>
    %42 = arith.mulf %40, %41 : vector<8x256xf32>
    %c239_i32 = arith.constant 239 : i32
    %43 = tpu.dynamic_rotate %19 by %c239_i32 dim 1 : vector<8x256xf32>, i32 -> vector<8x256xf32>
    %44 = vector.broadcast %15 : vector<1x256xf32> to vector<8x256xf32>
    %45 = arith.mulf %43, %44 : vector<8x256xf32>
    %46 = tpu.concatenate %24, %27, %30, %33, %19, %36, %39, %42, %45 in 0 : vector<8x256xf32>, vector<8x256xf32>, vector<8x256xf32>, vector<8x256xf32>, vector<8x256xf32>, vector<8x256xf32>, vector<8x256xf32>, vector<8x256xf32>, vector<8x256xf32> -> vector<72x256xf32>
    %47 = arith.truncf %46 : vector<72x256xf32> to vector<72x256xbf16>
    %cst = arith.constant dense<0.000000e+00> : vector<8x256xf32>
    %48 = tpu.matmul %21, %47, %cst {dimension_numbers = #tpu.dot_dimension_numbers<[1], [0], [0], [1], [0, 0, 1, 1], [], []>} : vector<8x72xbf16>, vector<72x256xbf16>, vector<8x256xf32> -> vector<8x256xf32>
    %cst_23 = arith.constant dense<0.000000e+00> : vector<8xf32>
    %49 = vector.multi_reduction <add>, %48, %cst_23 [1] : vector<8x256xf32> to vector<8xf32>
    %50 = vector.shape_cast %49 : vector<8xf32> to vector<8x1xf32>
    %cst_24 = arith.constant 3.906250e-03 : f32
    %51 = vector.broadcast %cst_24 : f32 to vector<8x1xf32>
    %52 = arith.mulf %50, %51 : vector<8x1xf32>
    %53 = arith.mulf %48, %48 : vector<8x256xf32>
    %cst_25 = arith.constant dense<0.000000e+00> : vector<8xf32>
    %54 = vector.multi_reduction <add>, %53, %cst_25 [1] : vector<8x256xf32> to vector<8xf32>
    %55 = vector.shape_cast %54 : vector<8xf32> to vector<8x1xf32>
    %cst_26 = arith.constant 3.906250e-03 : f32
    %56 = vector.broadcast %cst_26 : f32 to vector<8x1xf32>
    %57 = arith.mulf %55, %56 : vector<8x1xf32>
    %58 = arith.mulf %52, %52 : vector<8x1xf32>
    %59 = arith.subf %57, %58 : vector<8x1xf32>
    %60 = vector.broadcast %52 : vector<8x1xf32> to vector<8x256xf32>
    %61 = arith.subf %48, %60 : vector<8x256xf32>
    %cst_27 = arith.constant 9.99999974E-6 : f32
    %62 = vector.broadcast %cst_27 : f32 to vector<8x1xf32>
    %63 = arith.addf %59, %62 : vector<8x1xf32>
    %64 = math.rsqrt %63 : vector<8x1xf32>
    %65 = vector.broadcast %64 : vector<8x1xf32> to vector<8x256xf32>
    %66 = arith.mulf %61, %65 : vector<8x256xf32>
    %cst_28 = arith.constant 0.000000e+00 : f32
    %67 = vector.broadcast %cst_28 : f32 to vector<8x256xf32>
    %68 = arith.maximumf %66, %67 : vector<8x256xf32>
    %c0_29 = arith.constant 0 : index
    %c1_30 = arith.constant 1 : index
    %c0_31 = arith.constant 0 : index
    %c0_32 = arith.constant 0 : index
    %69 = vector.load %arg3[%c0_29, %c1_30, %c0_31, %c0_32] : memref<1x2x8x72xbf16, #tpu.memory_space<vmem>>, vector<1x1x8x72xbf16>
    %70 = vector.shape_cast %69 : vector<1x1x8x72xbf16> to vector<8x72xbf16>
    %c17_i32_33 = arith.constant 17 : i32
    %71 = tpu.dynamic_rotate %68 by %c17_i32_33 dim 1 : vector<8x256xf32>, i32 -> vector<8x256xf32>
    %72 = vector.broadcast %1 : vector<1x256xf32> to vector<8x256xf32>
    %73 = arith.mulf %71, %72 : vector<8x256xf32>
    %c16_i32_34 = arith.constant 16 : i32
    %74 = tpu.dynamic_rotate %68 by %c16_i32_34 dim 1 : vector<8x256xf32>, i32 -> vector<8x256xf32>
    %75 = vector.broadcast %3 : vector<1x256xf32> to vector<8x256xf32>
    %76 = arith.mulf %74, %75 : vector<8x256xf32>
    %c15_i32_35 = arith.constant 15 : i32
    %77 = tpu.dynamic_rotate %68 by %c15_i32_35 dim 1 : vector<8x256xf32>, i32 -> vector<8x256xf32>
    %78 = vector.broadcast %5 : vector<1x256xf32> to vector<8x256xf32>
    %79 = arith.mulf %77, %78 : vector<8x256xf32>
    %c1_i32_36 = arith.constant 1 : i32
    %80 = tpu.dynamic_rotate %68 by %c1_i32_36 dim 1 : vector<8x256xf32>, i32 -> vector<8x256xf32>
    %81 = vector.broadcast %7 : vector<1x256xf32> to vector<8x256xf32>
    %82 = arith.mulf %80, %81 : vector<8x256xf32>
    %c255_i32_37 = arith.constant 255 : i32
    %83 = tpu.dynamic_rotate %68 by %c255_i32_37 dim 1 : vector<8x256xf32>, i32 -> vector<8x256xf32>
    %84 = vector.broadcast %9 : vector<1x256xf32> to vector<8x256xf32>
    %85 = arith.mulf %83, %84 : vector<8x256xf32>
    %c241_i32_38 = arith.constant 241 : i32
    %86 = tpu.dynamic_rotate %68 by %c241_i32_38 dim 1 : vector<8x256xf32>, i32 -> vector<8x256xf32>
    %87 = vector.broadcast %11 : vector<1x256xf32> to vector<8x256xf32>
    %88 = arith.mulf %86, %87 : vector<8x256xf32>
    %c240_i32_39 = arith.constant 240 : i32
    %89 = tpu.dynamic_rotate %68 by %c240_i32_39 dim 1 : vector<8x256xf32>, i32 -> vector<8x256xf32>
    %90 = vector.broadcast %13 : vector<1x256xf32> to vector<8x256xf32>
    %91 = arith.mulf %89, %90 : vector<8x256xf32>
    %c239_i32_40 = arith.constant 239 : i32
    %92 = tpu.dynamic_rotate %68 by %c239_i32_40 dim 1 : vector<8x256xf32>, i32 -> vector<8x256xf32>
    %93 = vector.broadcast %15 : vector<1x256xf32> to vector<8x256xf32>
    %94 = arith.mulf %92, %93 : vector<8x256xf32>
    %95 = tpu.concatenate %73, %76, %79, %82, %68, %85, %88, %91, %94 in 0 : vector<8x256xf32>, vector<8x256xf32>, vector<8x256xf32>, vector<8x256xf32>, vector<8x256xf32>, vector<8x256xf32>, vector<8x256xf32>, vector<8x256xf32>, vector<8x256xf32> -> vector<72x256xf32>
    %96 = arith.truncf %95 : vector<72x256xf32> to vector<72x256xbf16>
    %cst_41 = arith.constant dense<0.000000e+00> : vector<8x256xf32>
    %97 = tpu.matmul %70, %96, %cst_41 {dimension_numbers = #tpu.dot_dimension_numbers<[1], [0], [0], [1], [0, 0, 1, 1], [], []>} : vector<8x72xbf16>, vector<72x256xbf16>, vector<8x256xf32> -> vector<8x256xf32>
    %cst_42 = arith.constant dense<0.000000e+00> : vector<8xf32>
    %98 = vector.multi_reduction <add>, %97, %cst_42 [1] : vector<8x256xf32> to vector<8xf32>
    %99 = vector.shape_cast %98 : vector<8xf32> to vector<8x1xf32>
    %cst_43 = arith.constant 3.906250e-03 : f32
    %100 = vector.broadcast %cst_43 : f32 to vector<8x1xf32>
    %101 = arith.mulf %99, %100 : vector<8x1xf32>
    %102 = arith.mulf %97, %97 : vector<8x256xf32>
    %cst_44 = arith.constant dense<0.000000e+00> : vector<8xf32>
    %103 = vector.multi_reduction <add>, %102, %cst_44 [1] : vector<8x256xf32> to vector<8xf32>
    %104 = vector.shape_cast %103 : vector<8xf32> to vector<8x1xf32>
    %cst_45 = arith.constant 3.906250e-03 : f32
    %105 = vector.broadcast %cst_45 : f32 to vector<8x1xf32>
    %106 = arith.mulf %104, %105 : vector<8x1xf32>
    %107 = arith.mulf %101, %101 : vector<8x1xf32>
    %108 = arith.subf %106, %107 : vector<8x1xf32>
    %109 = vector.broadcast %101 : vector<8x1xf32> to vector<8x256xf32>
    %110 = arith.subf %97, %109 : vector<8x256xf32>
    %cst_46 = arith.constant 9.99999974E-6 : f32
    %111 = vector.broadcast %cst_46 : f32 to vector<8x1xf32>
    %112 = arith.addf %108, %111 : vector<8x1xf32>
    %113 = math.rsqrt %112 : vector<8x1xf32>
    %114 = vector.broadcast %113 : vector<8x1xf32> to vector<8x256xf32>
    %115 = arith.mulf %110, %114 : vector<8x256xf32>
    %116 = arith.addf %19, %115 : vector<8x256xf32>
    %c0_47 = arith.constant 0 : index
    %c0_48 = arith.constant 0 : index
    %117 = vector.load %arg6[%c0_47, %c0_48] : memref<8x256xf32, #tpu.memory_space<vmem>>, vector<8x256xf32>
    tpu.vector_store %arg6[%c0_47, %c0_48], %116 {strides = array<i32>} : memref<8x256xf32, #tpu.memory_space<vmem>>, vector<8x256xf32>,
    %c1_i32_49 = arith.constant 1 : i32
    %118 = arith.cmpi eq, %arg1, %c1_i32_49 : i32
    %119 = arith.extui %118 : i1 to i32
    %c0_i32_50 = arith.constant 0 : i32
    %120 = arith.cmpi ne, %119, %c0_i32_50 : i32
    scf.if %120 {
      %c0_51 = arith.constant 0 : index
      %c0_52 = arith.constant 0 : index
      %121 = vector.load %arg6[%c0_51, %c0_52] : memref<8x256xf32, #tpu.memory_space<vmem>>, vector<4x256xf32>
      %c0_53 = arith.constant 0 : index
      %c0_54 = arith.constant 0 : index
      %c0_55 = arith.constant 0 : index
      %122 = vector.load %arg5[%c0_53, %c0_54, %c0_55] : memref<1x4x256xf32, #tpu.memory_space<vmem>>, vector<1x4x256xf32>
      %123 = vector.shape_cast %122 : vector<1x4x256xf32> to vector<4x256xf32>
      %124 = vector.shape_cast %121 : vector<4x256xf32> to vector<1x4x256xf32>
      tpu.vector_store %arg5[%c0_53, %c0_54, %c0_55], %124 {strides = array<i32>} : memref<1x4x256xf32, #tpu.memory_space<vmem>>, vector<1x4x256xf32>,
    } else {
    }
    return
  }
  func.func @transform_0(%arg0: i32, %arg1: i32) -> (i32, i32, i32) {
    %c0_i32 = arith.constant 0 : i32
    %c0_i32_0 = arith.constant 0 : i32
    %c0_i32_1 = arith.constant 0 : i32
    return %arg0, %c0_i32, %c0_i32_0 : i32, i32, i32
  }
  func.func @transform_1(%arg0: i32, %arg1: i32) -> (i32, i32, i32, i32) {
    %c0_i32 = arith.constant 0 : i32
    %c0_i32_0 = arith.constant 0 : i32
    %c0_i32_1 = arith.constant 0 : i32
    %c0_i32_2 = arith.constant 0 : i32
    return %arg1, %c0_i32, %c0_i32_0, %c0_i32_1 : i32, i32, i32, i32
  }
  func.func @transform_2(%arg0: i32, %arg1: i32) -> (i32, i32, i32) {
    %c0_i32 = arith.constant 0 : i32
    %c0_i32_0 = arith.constant 0 : i32
    %c0_i32_1 = arith.constant 0 : i32
    %c0_i32_2 = arith.constant 0 : i32
    return %c0_i32, %c0_i32_0, %c0_i32_1 : i32, i32, i32
  }
  func.func @transform_3(%arg0: i32, %arg1: i32) -> (i32, i32, i32) {
    %c0_i32 = arith.constant 0 : i32
    %c0_i32_0 = arith.constant 0 : i32
    %c0_i32_1 = arith.constant 0 : i32
    return %arg0, %c0_i32, %c0_i32_0 : i32, i32, i32
  }
}

</mosaic_0001>

<llo_original>
// kernel: tpu_custom_call.1
$region0: #{tpu_custom_call.1}
  #allocation0 [shape = 'u32[]', space=smem, size = 0x4, offset = 0x4, fixed_abs, tag = 'smem constant byte address 0x4 - core index']
  #allocation1 [shape = 'u32[144,128]{1,0:T(1,128)}', space=vmem, size = 0x12000, scoped, tag = 'internal scratch']
  %s0 = inlined_call_operand.hbm [shape: s32[8,128], index: 0, kind: input, shape index: {}]
  %s1 = inlined_call_operand.hbm [shape: s32[8,128], index: 1, kind: output, shape index: {}]
  %s2 = sld [smem:[#allocation0]]
  $region18: #{tpu_custom_call.1} parent=0
    _
  %s4 = ssub.s32 1, %s2
  %s5 = scalar_select 0, %s4, %s2
  $region1: #{tpu_custom_call.1} parent=0
    #allocation2 [shape = 'u8[4096]{0}', space=vmem, size = 0x1000, scoped, tag = 'input window, operand 0, single buffered']
    #allocation3 [shape = 's32[1]{0}', space=sflag, size = 0x4, scoped, tag = 'scoped memory for tpu_custom_call.1']
    #allocation4 [shape = 's32[1]{0}', space=sflag, size = 0x4, scoped, tag = 'scoped memory for tpu_custom_call.1']
    #allocation5 [shape = 'u8[4096]{0}', space=vmem, size = 0x1000, scoped, tag = 'output window, operand 0, single buffered']
    %6 = vsyncpa [#allocation3], 0
    %7 = vsyncpa [#allocation4], 0
    // Predicated region
    $region2: #{tpu_custom_call.1} parent=1 // pred_check
      _
    $region3: #{tpu_custom_call.1} parent=1 // pred_check_branch
      %9 = sbr.rel (0) target = $region5
    $region4: #{tpu_custom_call.1} parent=1 // pred_region
      %s11 = ssub.s32 128, 128
      %12 = vsyncadd [#allocation3], %s11
      %s14 = sshll.u32 [#allocation2], 4
      %s15 = int_to_ptr.vmem [resolvable:$true] %s14
      %17 = dma.hbm_to_vmem [thread:$0]  %s0, 128, %s15, [#allocation3]
    $region5: #{tpu_custom_call.1} parent=1 // pred_fallthru
      _
    // Predicated region
    $region6: #{tpu_custom_call.1} parent=1 // pred_check
      _
    $region7: #{tpu_custom_call.1} parent=1 // pred_check_branch
      %19 = sbr.rel (0) target = $region9
    $region8: #{tpu_custom_call.1} parent=1 // pred_region
      %20 = dma.done [#allocation3], 128
    $region9: #{tpu_custom_call.1} parent=1 // pred_fallthru
      _
    %v21 = vld [vmem:[#allocation2] sm:$0xff]
    %22 = vrot.lane.b32.xlu0 %v21, 1
    %v23 = vpop.permute.xlu0 %22
    %24 = vst [vmem:[#allocation5] sm:$0xff] %v23
    // Predicated region
    $region10: #{tpu_custom_call.1} parent=1 // pred_check
      _
    $region11: #{tpu_custom_call.1} parent=1 // pred_check_branch
      %26 = sbr.rel (0) target = $region13
    $region12: #{tpu_custom_call.1} parent=1 // pred_region
      %s28 = ssub.s32 128, 128
      %29 = vsyncadd [#allocation4], %s28
      %s31 = sshll.u32 [#allocation5], 4
      %s32 = int_to_ptr.vmem [resolvable:$true] %s31
      %34 = dma.vmem_to_hbm [thread:$0]  %s32, 128, %s1, [#allocation4]
    $region13: #{tpu_custom_call.1} parent=1 // pred_fallthru
      _
    // Predicated region
    $region14: #{tpu_custom_call.1} parent=1 // pred_check
      _
    $region15: #{tpu_custom_call.1} parent=1 // pred_check_branch
      %36 = sbr.rel (0) target = $region17
    $region16: #{tpu_custom_call.1} parent=1 // pred_region
      %37 = dma.done [#allocation4], 128
    $region17: #{tpu_custom_call.1} parent=1 // pred_fallthru
      _
    %38 = vsyncpa [#allocation3], 1
    %39 = vsyncpa [#allocation4], 1

// kernel: tpu_custom_call.1
$region0: #{tpu_custom_call.1}
  #allocation0 [shape = 'u32[]', space=smem, size = 0x4, offset = 0x4, fixed_abs, tag = 'smem constant byte address 0x4 - core index']
  #allocation1 [shape = 'u32[144,128]{1,0:T(1,128)}', space=vmem, size = 0x12000, scoped, tag = 'internal scratch']
  #allocation2 [shape = 'f32[8,256]{1,0:T(8,128)}', space=vmem, size = 0x2000, scoped, tag = 'scratch operand']
  %s0 = inlined_call_operand.hbm [shape: f32[2,8,256], index: 0, kind: input, shape index: {}]
  %s1 = inlined_call_operand.hbm [shape: bf16[2,2,8,72], index: 1, kind: input, shape index: {}]
  %s2 = inlined_call_operand.hbm [shape: f32[9,1,256], index: 2, kind: input, shape index: {}]
  %s3 = inlined_call_operand.hbm [shape: f32[2,4,256], index: 3, kind: output, shape index: {}]
  %s4 = sld [smem:[#allocation0]]
  $region65: #{tpu_custom_call.1} parent=0
    _
  %s6 = ssub.s32 1, %s4
  %s7 = scalar_select 0, %s6, %s4
  $region1: #{tpu_custom_call.1} parent=0
    #allocation3 [shape = 'u8[16384]{0}', space=vmem, size = 0x4000, scoped, tag = 'input window, operand 0']
    #allocation4 [shape = 's32[2]{0}', space=sflag, size = 0x8, scoped, tag = 'scoped memory for tpu_custom_call.1']
    #allocation5 [shape = 's32[2]{0}', space=sflag, size = 0x8, scoped, tag = 'scoped memory for tpu_custom_call.1']
    #allocation6 [shape = 'u8[8192]{0}', space=vmem, size = 0x2000, scoped, tag = 'input window, operand 1']
    #allocation7 [shape = 's32[2]{0}', space=sflag, size = 0x8, scoped, tag = 'scoped memory for tpu_custom_call.1']
    #allocation8 [shape = 'u8[9216]{0}', space=vmem, size = 0x2400, scoped, tag = 'input window, operand 2, single buffered']
    #allocation9 [shape = 'u8[8192]{0}', space=vmem, size = 0x2000, scoped, tag = 'output window, operand 0']
    %8 = vsyncpa [#allocation4], 0
    %s9 = scalar_lea.sflag [#allocation4], 1
    %10 = vsyncpa %s9, 0
    %11 = vsyncpa [#allocation7], 0
    %s12 = scalar_lea.sflag [#allocation7], 1
    %13 = vsyncpa %s12, 0
    %14 = vsyncpa [#allocation5], 0
    %s15 = scalar_lea.sflag [#allocation5], 1
    %16 = vsyncpa %s15, 0
    loop: start=0, step=1, limit=6
    $region2: #{tpu_custom_call.1} parent=1 // loop_pre_header
      _
    $region3: #{tpu_custom_call.1} parent=1 // loop_header
      %s18 = sphi 0, %s22
      %p19 = scmp.ge.s32.totalorder %s18, 6
      %s25 = sphi 0, %s37
      %s26 = sphi 0, %s33
      %s27 = sphi 0, %s25
      %s28 = sphi 0, %s26
      %s29 = sphi 0, %s27
      %s30 = sphi 0, %s28
      %s40 = sphi 0, %s42
      %s43 = sphi 0, %s40
      %s44 = sphi 0, %s43
      %s60 = sphi 0, %s44
      %s66 = sphi 0, %s68
      %s69 = sphi 0, %s66
      %s70 = sphi 0, %s69
      %s86 = sphi 0, %s70
      %s90 = sphi 0, %s90
      %s92 = sphi 0, %s90
      %s93 = sphi 0, %s92
      %s107 = sphi 0, %s93
      %s113 = sphi 0, %s115
      %s116 = sphi 0, %s113
      %s117 = sphi 0, %s116
      %s133 = sphi 0, %s117
    $region4: #{tpu_custom_call.1} parent=1 // loop_header_branch
      %21 = sbr.rel (%p19) target = $region8
    $region5: #{tpu_custom_call.1} parent=1 // loop_body
      %s23 = ssub.s32 %s18, 1
      %s24 = ssub.s32 %s18, 2
      %s31 = sadd.s32 1, %s26
      %p32 = scmp.ge.s32.totalorder %s31, 2
      %s33 = scalar_select %p32, 0, %s31
      %s34 = sadd.s32 1, %s25
      %s35 = scalar_select %p32, %s34, %s25
      %p36 = scmp.ge.s32.totalorder %s35, 2
      %s37 = scalar_select %p36, 0, %s35
      %s38 = ssub.s32 %s25, %s37
      %p39 = scmp.eq.s32.totalorder %s38, 0
      %s41 = sadd.s32 %s40, 1
      %s42 = scalar_select %p39, %s40, %s41
      %p45 = pneg %p39
      %p46 = scmp.eq.s32.totalorder %s18, 3
      %p47 = por %p45, %p46
      %p48 = scmp.ne.s32.totalorder %s40, %s43
      %p49 = scmp.eq.s32.totalorder %s18, 0
      %p50 = por %p48, %p49
      %p51 = scmp.ne.s32.totalorder %s40, %s43
      %p52 = scmp.eq.s32.totalorder %s23, 3
      %p53 = por %p51, %p52
      %p54 = scmp.ne.s32.totalorder %s43, %s44
      %p55 = scmp.eq.s32.totalorder %s23, 0
      %p56 = por %p54, %p55
      %p57 = scmp.ne.s32.totalorder %s43, %s44
      %p58 = scmp.eq.s32.totalorder %s24, 3
      %p59 = por %p57, %p58
      %p61 = scmp.ne.s32.totalorder %s44, %s60
      %p62 = scmp.eq.s32.totalorder %s24, 0
      %p63 = por %p61, %p62
      %s64 = ssub.s32 %s26, %s33
      %p65 = scmp.eq.s32.totalorder %s64, 0
      %s67 = sadd.s32 %s66, 1
      %s68 = scalar_select %p65, %s66, %s67
      %p71 = pneg %p65
      %p72 = scmp.eq.s32.totalorder %s18, 3
      %p73 = por %p71, %p72
      %p74 = scmp.ne.s32.totalorder %s66, %s69
      %p75 = scmp.eq.s32.totalorder %s18, 0
      %p76 = por %p74, %p75
      %p77 = scmp.ne.s32.totalorder %s66, %s69
      %p78 = scmp.eq.s32.totalorder %s23, 3
      %p79 = por %p77, %p78
      %p80 = scmp.ne.s32.totalorder %s69, %s70
      %p81 = scmp.eq.s32.totalorder %s23, 0
      %p82 = por %p80, %p81
      %p83 = scmp.ne.s32.totalorder %s69, %s70
      %p84 = scmp.eq.s32.totalorder %s24, 3
      %p85 = por %p83, %p84
      %p87 = scmp.ne.s32.totalorder %s70, %s86
      %p88 = scmp.eq.s32.totalorder %s24, 0
      %p89 = por %p87, %p88
      %s91 = sadd.s32 %s90, 1
      %p94 = scmp.eq.s32.totalorder %s18, 3
      %p95 = scmp.ne.s32.totalorder %s90, %s92
      %p96 = scmp.eq.s32.totalorder %s18, 0
      %p97 = por %p95, %p96
      %p98 = scmp.ne.s32.totalorder %s90, %s92
      %p99 = scmp.eq.s32.totalorder %s23, 3
      %p100 = por %p98, %p99
      %p101 = scmp.ne.s32.totalorder %s92, %s93
      %p102 = scmp.eq.s32.totalorder %s23, 0
      %p103 = por %p101, %p102
      %p104 = scmp.ne.s32.totalorder %s92, %s93
      %p105 = scmp.eq.s32.totalorder %s24, 3
      %p106 = por %p104, %p105
      %p108 = scmp.ne.s32.totalorder %s93, %s107
      %p109 = scmp.eq.s32.totalorder %s24, 0
      %p110 = por %p108, %p109
      %s111 = ssub.s32 %s25, %s37
      %p112 = scmp.eq.s32.totalorder %s111, 0
      %s114 = sadd.s32 %s113, 1
      %s115 = scalar_select %p112, %s113, %s114
      %p118 = pneg %p112
      %p119 = scmp.eq.s32.totalorder %s18, 3
      %p120 = por %p118, %p119
      %p121 = scmp.ne.s32.totalorder %s113, %s116
      %p122 = scmp.eq.s32.totalorder %s18, 0
      %p123 = por %p121, %p122
      %p124 = scmp.ne.s32.totalorder %s113, %s116
      %p125 = scmp.eq.s32.totalorder %s23, 3
      %p126 = por %p124, %p125
      %p127 = scmp.ne.s32.totalorder %s116, %s117
      %p128 = scmp.eq.s32.totalorder %s23, 0
      %p129 = por %p127, %p128
      %p130 = scmp.ne.s32.totalorder %s116, %s117
      %p131 = scmp.eq.s32.totalorder %s24, 3
      %p132 = por %p130, %p131
      %p134 = scmp.ne.s32.totalorder %s117, %s133
      %p135 = scmp.eq.s32.totalorder %s24, 0
      %p136 = por %p134, %p135
      %p137 = scmp.le.s32.totalorder 1, %s18
      %p138 = scmp.lt.s32.totalorder %s18, 5
      %p139 = pnand %p137, %p138
      %p140 = pneg %p139
      // Predicated region
      $region9: #{tpu_custom_call.1} parent=5 // pred_check
        _
      $region10: #{tpu_custom_call.1} parent=5 // pred_check_branch
        %142 = sbr.rel (%p139) target = $region12
      $region11: #{tpu_custom_call.1} parent=5 // pred_region
        %s143 = ssub.s32 %s18, 1
        // Predicated region
        $region13: #{tpu_custom_call.1} parent=11 // pred_check
          %p144 = pneg %p103
        $region14: #{tpu_custom_call.1} parent=11 // pred_check_branch
          %146 = sbr.rel (%p144) target = $region16
        $region15: #{tpu_custom_call.1} parent=11 // pred_region
          %s148 = ssub.s32 288, 288
          %149 = vsyncadd [#allocation7], %s148
          %s150 = sshll.u32 [#allocation8], 4
          %s151 = int_to_ptr.vmem [resolvable:$true] %s150
          %156 = dma.hbm_to_vmem [thread:$0]  %s2, 288, %s151, [#allocation7], 32, 32, 2
        $region16: #{tpu_custom_call.1} parent=11 // pred_fallthru
          _
      $region12: #{tpu_custom_call.1} parent=5 // pred_fallthru
        _
      %p157 = scmp.lt.s32.totalorder %s18, 4
      // Predicated region
      $region17: #{tpu_custom_call.1} parent=5 // pred_check
        %p158 = pneg %p157
      $region18: #{tpu_custom_call.1} parent=5 // pred_check_branch
        %160 = sbr.rel (%p158) target = $region20
      $region19: #{tpu_custom_call.1} parent=5 // pred_region
        // Predicated region
        $region21: #{tpu_custom_call.1} parent=19 // pred_check
          %p161 = pneg %p50
        $region22: #{tpu_custom_call.1} parent=19 // pred_check_branch
          %163 = sbr.rel (%p161) target = $region24
        $region23: #{tpu_custom_call.1} parent=19 // pred_region
          %s164 = sand.u32 %s40, 1
          %s165 = scalar_lea.sflag [#allocation4], %s164
          %s166 = sand.u32 %s40, 1
          %s167 = smul.addr %s166, 16
          %s168 = scalar_lea.vmem [#allocation3], %s167
          %s170 = ssub.s32 256, 256
          %171 = vsyncadd %s165, %s170
          %s172 = smul.addr %s25, 2
          %s173 = smul.addr %s172, 128
          %s174 = scalar_lea.hbm %s0, %s173
          %s176 = sshll.u32 %s168, 4
          %s177 = int_to_ptr.vmem [resolvable:$true] %s176
          %179 = dma.hbm_to_vmem [thread:$0]  %s174, 256, %s177, %s165
        $region24: #{tpu_custom_call.1} parent=19 // pred_fallthru
          _
        // Predicated region
        $region25: #{tpu_custom_call.1} parent=19 // pred_check
          %p180 = pneg %p76
        $region26: #{tpu_custom_call.1} parent=19 // pred_check_branch
          %182 = sbr.rel (%p180) target = $region28
        $region27: #{tpu_custom_call.1} parent=19 // pred_region
          %s183 = sand.u32 %s18, 1
          %s184 = scalar_lea.sflag [#allocation7], %s183
          %s185 = sand.u32 %s66, 1
          %s186 = smul.addr %s185, 8
          %s187 = scalar_lea.vmem [#allocation6], %s186
          %s189 = ssub.s32 128, 128
          %190 = vsyncadd %s184, %s189
          %s191 = smul.addr %s26, 2
          %s192 = smul.addr %s191, 64
          %s193 = scalar_lea.hbm %s1, %s192
          %s194 = sshll.u32 %s187, 4
          %s195 = int_to_ptr.vmem [resolvable:$true] %s194
          %200 = dma.hbm_to_vmem [thread:$0]  %s193, 128, %s195, %s184, 64, 64, 4
        $region28: #{tpu_custom_call.1} parent=19 // pred_fallthru
          _
      $region20: #{tpu_custom_call.1} parent=5 // pred_fallthru
        _
      %p201 = scmp.le.s32.totalorder 1, %s18
      %p202 = scmp.lt.s32.totalorder %s18, 5
      %p203 = pnand %p201, %p202
      %p204 = pneg %p203
      // Predicated region
      $region29: #{tpu_custom_call.1} parent=5 // pred_check
        _
      $region30: #{tpu_custom_call.1} parent=5 // pred_check_branch
        %206 = sbr.rel (%p203) target = $region32
      $region31: #{tpu_custom_call.1} parent=5 // pred_region
        %s207 = ssub.s32 %s18, 1
        %s208 = sand.u32 %s43, 1
        %s209 = scalar_lea.sflag [#allocation4], %s208
        %s210 = sand.u32 %s43, 1
        %s211 = smul.addr %s210, 16
        %s212 = scalar_lea.vmem [#allocation3], %s211
        // Predicated region
        $region33: #{tpu_custom_call.1} parent=31 // pred_check
          %p213 = pneg %p56
        $region34: #{tpu_custom_call.1} parent=31 // pred_check_branch
          %215 = sbr.rel (%p213) target = $region36
        $region35: #{tpu_custom_call.1} parent=31 // pred_region
          %216 = dma.done %s209, 256
        $region36: #{tpu_custom_call.1} parent=31 // pred_fallthru
          _
        %s217 = sand.u32 %s23, 1
        %s218 = scalar_lea.sflag [#allocation7], %s217
        %s219 = sand.u32 %s69, 1
        %s220 = smul.addr %s219, 8
        %s221 = scalar_lea.vmem [#allocation6], %s220
        // Predicated region
        $region37: #{tpu_custom_call.1} parent=31 // pred_check
          %p222 = pneg %p82
        $region38: #{tpu_custom_call.1} parent=31 // pred_check_branch
          %224 = sbr.rel (%p222) target = $region40
        $region39: #{tpu_custom_call.1} parent=31 // pred_region
          %225 = dma.done %s218, 128
        $region40: #{tpu_custom_call.1} parent=31 // pred_fallthru
          _
        // Predicated region
        $region41: #{tpu_custom_call.1} parent=31 // pred_check
          %p226 = pneg %p103
        $region42: #{tpu_custom_call.1} parent=31 // pred_check_branch
          %228 = sbr.rel (%p226) target = $region44
        $region43: #{tpu_custom_call.1} parent=31 // pred_region
          %229 = dma.done [#allocation7], 288
        $region44: #{tpu_custom_call.1} parent=31 // pred_fallthru
          _
        %s230 = sand.u32 %s43, 1
        %s231 = scalar_lea.sflag [#allocation4], %s230
        %s232 = sand.u32 %s43, 1
        %s233 = smul.addr %s232, 16
        %s234 = scalar_lea.vmem [#allocation3], %s233
        %p235 = pneg %p56
        %p236 = pneg %p53
        %s237 = sand.u32 %s23, 1
        %s238 = scalar_lea.sflag [#allocation7], %s237
        %s239 = sand.u32 %s69, 1
        %s240 = smul.addr %s239, 8
        %s241 = scalar_lea.vmem [#allocation6], %s240
        %p242 = pneg %p82
        %p243 = pneg %p79
        %p244 = pneg %p103
        %p245 = pneg %p100
        %p246 = pneg %p129
        %p247 = pneg %p126
        %s248 = sand.u32 %s116, 1
        %s249 = scalar_lea.sflag [#allocation5], %s248
        %s250 = sand.u32 %s116, 1
        %s251 = smul.addr %s250, 8
        %s252 = scalar_lea.vmem [#allocation9], %s251
        %v254 = vld [vmem:[#allocation8] sm:$0x3]
        %s255 = scalar_lea.vmem [#allocation8], 2
        %v256 = vld [vmem:[%s255] sm:$0x3]
        %s257 = scalar_lea.vmem [#allocation8], 4
        %v258 = vld [vmem:[%s257] sm:$0x3]
        %s259 = scalar_lea.vmem [#allocation8], 6
        %v260 = vld [vmem:[%s259] sm:$0x3]
        %s261 = scalar_lea.vmem [#allocation8], 10
        %v262 = vld [vmem:[%s261] sm:$0x3]
        %s263 = scalar_lea.vmem [#allocation8], 12
        %v264 = vld [vmem:[%s263] sm:$0x3]
        %s265 = scalar_lea.vmem [#allocation8], 14
        %v266 = vld [vmem:[%s265] sm:$0x3]
        %s267 = scalar_lea.vmem [#allocation8], 16
        %v268 = vld [vmem:[%s267] sm:$0x3]
        %p269 = scmp.eq.s32.totalorder %s28, 0
        // Predicated region
        $region45: #{tpu_custom_call.1} parent=31 // pred_check
          %p270 = pneg %p269
        $region46: #{tpu_custom_call.1} parent=31 // pred_check_branch
          %272 = sbr.rel (%p270) target = $region48
        $region47: #{tpu_custom_call.1} parent=31 // pred_region
          %v273 = vld [vmem:[%s212] sm:$0xff]
          %v274 = vld [vmem:[%s212 + $0x8] sm:$0xff]
          %275 = vst [vmem:[#allocation2] sm:$0xff] %v273
          %276 = vst [vmem:[#allocation2 + $0x8] sm:$0xff] %v274
        $region48: #{tpu_custom_call.1} parent=31 // pred_fallthru
          _
        %v277 = vld [vmem:[#allocation2] sm:$0xff]
        %v278 = vld [vmem:[#allocation2 + $0x8] sm:$0xff]
        %v279 = vld [vmem:[%s221] sm:$0xf]
        %280 = vrot.lane.b32.xlu0 %v277, 17
        %v281 = vpop.permute.xlu0 %280
        %282 = vrot.lane.b32.xlu0 %v278, 17
        %v283 = vpop.permute.xlu0 %282
        %v284 = vlaneseq
        %v285 = vand.u32 %v284, 127
        %vm286 = vcmp.lt.s32.totalorder %v285, 17
        %v287 = vsel %vm286, %v281, %v283
        %v288 = vsel %vm286, %v283, %v281
        %v290 = vlaneseq
        %v291 = vshrl.u32 %v290, 7
        %v292 = vsub.s32 0, %v291
        %v293 = vrot.slane %v254, %v292
        %v294 = vlaneseq
        %v295 = vshrl.u32 %v294, 7
        %v296 = vsub.s32 1, %v295
        %v297 = vrot.slane %v254, %v296
        %v300 = vmul.f32 %v288, %v293
        %v301 = vmul.f32 %v287, %v297
        %302 = vrot.lane.b32.xlu0 %v277, 16
        %v303 = vpop.permute.xlu0 %302
        %304 = vrot.lane.b32.xlu0 %v278, 16
        %v305 = vpop.permute.xlu0 %304
        %vm306 = vcmp.lt.s32.totalorder %v285, 16
        %v307 = vsel %vm306, %v303, %v305
        %v308 = vsel %vm306, %v305, %v303
        %v310 = vlaneseq
        %v311 = vshrl.u32 %v310, 7
        %v312 = vsub.s32 0, %v311
        %v313 = vrot.slane %v256, %v312
        %v314 = vlaneseq
        %v315 = vshrl.u32 %v314, 7
        %v316 = vsub.s32 1, %v315
        %v317 = vrot.slane %v256, %v316
        %v320 = vmul.f32 %v308, %v313
        %v321 = vmul.f32 %v307, %v317
        %322 = vrot.lane.b32.xlu0 %v277, 15
        %v323 = vpop.permute.xlu0 %322
        %324 = vrot.lane.b32.xlu0 %v278, 15
        %v325 = vpop.permute.xlu0 %324
        %vm326 = vcmp.lt.s32.totalorder %v285, 15
        %v327 = vsel %vm326, %v323, %v325
        %v328 = vsel %vm326, %v325, %v323
        %v330 = vlaneseq
        %v331 = vshrl.u32 %v330, 7
        %v332 = vsub.s32 0, %v331
        %v333 = vrot.slane %v258, %v332
        %v334 = vlaneseq
        %v335 = vshrl.u32 %v334, 7
        %v336 = vsub.s32 1, %v335
        %v337 = vrot.slane %v258, %v336
        %v340 = vmul.f32 %v328, %v333
        %v341 = vmul.f32 %v327, %v337
        %342 = vrot.lane.b32.xlu0 %v277, 1
        %v343 = vpop.permute.xlu0 %342
        %344 = vrot.lane.b32.xlu0 %v278, 1
        %v345 = vpop.permute.xlu0 %344
        %vm346 = vcmp.lt.s32.totalorder %v285, 1
        %v347 = vsel %vm346, %v343, %v345
        %v348 = vsel %vm346, %v345, %v343
        %v350 = vlaneseq
        %v351 = vshrl.u32 %v350, 7
        %v352 = vsub.s32 0, %v351
        %v353 = vrot.slane %v260, %v352
        %v354 = vlaneseq
        %v355 = vshrl.u32 %v354, 7
        %v356 = vsub.s32 1, %v355
        %v357 = vrot.slane %v260, %v356
        %v360 = vmul.f32 %v348, %v353
        %v361 = vmul.f32 %v347, %v357
        %362 = vrot.lane.b32.xlu0 %v277, 127
        %v363 = vpop.permute.xlu0 %362
        %364 = vrot.lane.b32.xlu0 %v278, 127
        %v365 = vpop.permute.xlu0 %364
        %vm366 = vcmp.lt.s32.totalorder %v285, 127
        %v367 = vsel %vm366, %v363, %v365
        %v368 = vsel %vm366, %v365, %v363
        %v370 = vlaneseq
        %v371 = vshrl.u32 %v370, 7
        %v372 = vsub.s32 0, %v371
        %v373 = vrot.slane %v262, %v372
        %v374 = vlaneseq
        %v375 = vshrl.u32 %v374, 7
        %v376 = vsub.s32 1, %v375
        %v377 = vrot.slane %v262, %v376
        %v380 = vmul.f32 %v367, %v373
        %v381 = vmul.f32 %v368, %v377
        %382 = vrot.lane.b32.xlu0 %v277, 113
        %v383 = vpop.permute.xlu0 %382
        %384 = vrot.lane.b32.xlu0 %v278, 113
        %v385 = vpop.permute.xlu0 %384
        %vm386 = vcmp.lt.s32.totalorder %v285, 113
        %v387 = vsel %vm386, %v383, %v385
        %v388 = vsel %vm386, %v385, %v383
        %v390 = vlaneseq
        %v391 = vshrl.u32 %v390, 7
        %v392 = vsub.s32 0, %v391
        %v393 = vrot.slane %v264, %v392
        %v394 = vlaneseq
        %v395 = vshrl.u32 %v394, 7
        %v396 = vsub.s32 1, %v395
        %v397 = vrot.slane %v264, %v396
        %v400 = vmul.f32 %v387, %v393
        %v401 = vmul.f32 %v388, %v397
        %402 = vrot.lane.b32.xlu0 %v277, 112
        %v403 = vpop.permute.xlu0 %402
        %404 = vrot.lane.b32.xlu0 %v278, 112
        %v405 = vpop.permute.xlu0 %404
        %vm406 = vcmp.lt.s32.totalorder %v285, 112
        %v407 = vsel %vm406, %v403, %v405
        %v408 = vsel %vm406, %v405, %v403
        %v410 = vlaneseq
        %v411 = vshrl.u32 %v410, 7
        %v412 = vsub.s32 0, %v411
        %v413 = vrot.slane %v266, %v412
        %v414 = vlaneseq
        %v415 = vshrl.u32 %v414, 7
        %v416 = vsub.s32 1, %v415
        %v417 = vrot.slane %v266, %v416
        %v420 = vmul.f32 %v407, %v413
        %v421 = vmul.f32 %v408, %v417
        %422 = vrot.lane.b32.xlu0 %v277, 111
        %v423 = vpop.permute.xlu0 %422
        %424 = vrot.lane.b32.xlu0 %v278, 111
        %v425 = vpop.permute.xlu0 %424
        %vm426 = vcmp.lt.s32.totalorder %v285, 111
        %v427 = vsel %vm426, %v423, %v425
        %v428 = vsel %vm426, %v425, %v423
        %v430 = vlaneseq
        %v431 = vshrl.u32 %v430, 7
        %v432 = vsub.s32 0, %v431
        %v433 = vrot.slane %v268, %v432
        %v434 = vlaneseq
        %v435 = vshrl.u32 %v434, 7
        %v436 = vsub.s32 1, %v435
        %v437 = vrot.slane %v268, %v436
        %v440 = vmul.f32 %v427, %v433
        %v441 = vmul.f32 %v428, %v437
        %v442 = vpack.c.bf16 %v320, %v300
        %v443 = vpack.c.bf16 %v321, %v301
        %v444 = vpack.c.bf16 %v360, %v340
        %v445 = vpack.c.bf16 %v361, %v341
        %v446 = vpack.c.bf16 %v380, %v277
        %v447 = vpack.c.bf16 %v381, %v278
        %v448 = vpack.c.bf16 %v420, %v400
        %v449 = vpack.c.bf16 %v421, %v401
        %v450 = vpack.c.bf16 %v440, %v440
        %v451 = vpack.c.bf16 %v441, %v441
        %vm452 = vcmask 588800
        %v454 = vsel %vm452, %v279, 0
        %vm456 = vcmask 1043456
        %v458 = vsel %vm456, %v450, 0
        %v461 = vsel %vm456, %v451, 0
        %463 = vmatprep.subr.bf16.mxu0 0
        %464 = vmatpush1.bf16.msra.mxu0 0
        %465 = vmatprep.subr.bf16.mxu0 0
        %466 = vmatpush1.bf16.msra.mxu0 0
        %467 = vmatprep.subr.bf16.mxu0 0
        %468 = vmatpush1.bf16.msra.mxu0 0
        %469 = vmatprep.subr.bf16.mxu0 %v461
        %470 = vmatpush1.bf16.msra.mxu0 %v458
        %471 = vmatprep.subr.bf16.mxu0 %v449
        %472 = vmatpush1.bf16.msra.mxu0 %v448
        %473 = vmatprep.subr.bf16.mxu0 %v447
        %474 = vmatpush1.bf16.msra.mxu0 %v446
        %475 = vmatprep.subr.bf16.mxu0 %v445
        %476 = vmatpush1.bf16.msra.mxu0 %v444
        %477 = vmatprep.subr.bf16.mxu0 %v443
        %478 = vmatpush1.bf16.msra.mxu0 %v442
        %479 = vmatprep.subr.bf16.mxu0 0
        %480 = vmatpush2.bf16.msra.mxu0 0
        %481 = vmatprep.subr.bf16.mxu0 0
        %482 = vmatpush2.bf16.msra.mxu0 0
        %483 = vmatprep.subr.bf16.mxu0 0
        %484 = vmatpush2.bf16.msra.mxu0 0
        %485 = vmatprep.subr.bf16.mxu0 0
        %486 = vmatpush2.bf16.msra.mxu0 0
        %487 = vmatprep.subr.bf16.mxu0 0
        %488 = vmatpush2.bf16.msra.mxu0 0
        %489 = vmatprep.subr.bf16.mxu0 0
        %490 = vmatpush2.bf16.msra.mxu0 0
        %491 = vmatprep.subr.bf16.mxu0 0
        %492 = vmatpush2.bf16.msra.mxu0 0
        %493 = vmatprep.subr.bf16.mxu0 0
        %494 = vmatpush2.bf16.msra.mxu0 0
        %495 = vmatprep.mubr.bf16.mxu0 0
        %496 = vmatmul.mubr.bf16.gmra.mxu0 %v454
        %v497 = vpop.f32.mrf.mxu0
        %v498 = vadd.f32 0.0, %v497
        %v499 = vpop.f32.mrf.mxu0
        %v500 = vadd.f32 0.0, %v499
        %v501 = vpop.f32.mrf.mxu0
        %v502 = vpop.f32.mrf.mxu0
        %503 = vdwg.mxu0
        %v504 = vadd.f32 %v498, %v500
        %505 = vadd.xlane.f32.xlu0 %v504
        %v506 = vpop.xlane.xlu0 %505
        %v507 = vmul.f32 %v506, 0.00390625
        %v508 = vmul.f32 %v498, %v498
        %v509 = vmul.f32 %v500, %v500
        %v510 = vadd.f32 %v508, %v509
        %511 = vadd.xlane.f32.xlu0 %v510
        %v512 = vpop.xlane.xlu0 %511
        %v513 = vmul.f32 %v512, 0.00390625
        %v514 = vmul.f32 %v507, %v507
        %v515 = vsub.f32 %v513, %v514
        %v516 = vsub.f32 %v498, %v507
        %v517 = vsub.f32 %v500, %v507
        %v518 = vadd.f32 %v515, 1e-05
        %v519 = vrsqrt.pop %v518
        %v520 = vmul.f32 %v516, %v519
        %v521 = vmul.f32 %v517, %v519
        %v522 = vmax.f32 %v520, 0.0
        %v523 = vmax.f32 %v521, 0.0
        %s524 = scalar_lea.vmem %s221, 4 [#allocation6]
        %v525 = vld [vmem:[%s524] sm:$0xf]
        %526 = vrot.lane.b32.xlu0 %v522, 17
        %v527 = vpop.permute.xlu0 %526
        %528 = vrot.lane.b32.xlu0 %v523, 17
        %v529 = vpop.permute.xlu0 %528
        %v530 = vsel %vm286, %v527, %v529
        %v531 = vsel %vm286, %v529, %v527
        %v532 = vmul.f32 %v531, %v293
        %v533 = vmul.f32 %v530, %v297
        %534 = vrot.lane.b32.xlu0 %v522, 16
        %v535 = vpop.permute.xlu0 %534
        %536 = vrot.lane.b32.xlu0 %v523, 16
        %v537 = vpop.permute.xlu0 %536
        %v538 = vsel %vm306, %v535, %v537
        %v539 = vsel %vm306, %v537, %v535
        %v540 = vmul.f32 %v539, %v313
        %v541 = vmul.f32 %v538, %v317
        %542 = vrot.lane.b32.xlu0 %v522, 15
        %v543 = vpop.permute.xlu0 %542
        %544 = vrot.lane.b32.xlu0 %v523, 15
        %v545 = vpop.permute.xlu0 %544
        %v546 = vsel %vm326, %v543, %v545
        %v547 = vsel %vm326, %v545, %v543
        %v548 = vmul.f32 %v547, %v333
        %v549 = vmul.f32 %v546, %v337
        %550 = vrot.lane.b32.xlu0 %v522, 1
        %v551 = vpop.permute.xlu0 %550
        %552 = vrot.lane.b32.xlu0 %v523, 1
        %v553 = vpop.permute.xlu0 %552
        %v554 = vsel %vm346, %v551, %v553
        %v555 = vsel %vm346, %v553, %v551
        %v556 = vmul.f32 %v555, %v353
        %v557 = vmul.f32 %v554, %v357
        %558 = vrot.lane.b32.xlu0 %v522, 127
        %v559 = vpop.permute.xlu0 %558
        %560 = vrot.lane.b32.xlu0 %v523, 127
        %v561 = vpop.permute.xlu0 %560
        %v562 = vsel %vm366, %v559, %v561
        %v563 = vsel %vm366, %v561, %v559
        %v564 = vmul.f32 %v562, %v373
        %v565 = vmul.f32 %v563, %v377
        %566 = vrot.lane.b32.xlu0 %v522, 113
        %v567 = vpop.permute.xlu0 %566
        %568 = vrot.lane.b32.xlu0 %v523, 113
        %v569 = vpop.permute.xlu0 %568
        %v570 = vsel %vm386, %v567, %v569
        %v571 = vsel %vm386, %v569, %v567
        %v572 = vmul.f32 %v570, %v393
        %v573 = vmul.f32 %v571, %v397
        %574 = vrot.lane.b32.xlu0 %v522, 112
        %v575 = vpop.permute.xlu0 %574
        %576 = vrot.lane.b32.xlu0 %v523, 112
        %v577 = vpop.permute.xlu0 %576
        %v578 = vsel %vm406, %v575, %v577
        %v579 = vsel %vm406, %v577, %v575
        %v580 = vmul.f32 %v578, %v413
        %v581 = vmul.f32 %v579, %v417
        %582 = vrot.lane.b32.xlu0 %v522, 111
        %v583 = vpop.permute.xlu0 %582
        %584 = vrot.lane.b32.xlu0 %v523, 111
        %v585 = vpop.permute.xlu0 %584
        %v586 = vsel %vm426, %v583, %v585
        %v587 = vsel %vm426, %v585, %v583
        %v588 = vmul.f32 %v586, %v433
        %v589 = vmul.f32 %v587, %v437
        %v590 = vpack.c.bf16 %v540, %v532
        %v591 = vpack.c.bf16 %v541, %v533
        %v592 = vpack.c.bf16 %v556, %v548
        %v593 = vpack.c.bf16 %v557, %v549
        %v594 = vpack.c.bf16 %v564, %v522
        %v595 = vpack.c.bf16 %v565, %v523
        %v596 = vpack.c.bf16 %v580, %v572
        %v597 = vpack.c.bf16 %v581, %v573
        %v598 = vpack.c.bf16 %v588, %v588
        %v599 = vpack.c.bf16 %v589, %v589
        %v601 = vsel %vm452, %v525, 0
        %v604 = vsel %vm456, %v598, 0
        %v607 = vsel %vm456, %v599, 0
        %609 = vmatprep.subr.bf16.mxu0 0
        %610 = vmatpush1.bf16.msra.mxu0 0
        %611 = vmatprep.subr.bf16.mxu0 0
        %612 = vmatpush1.bf16.msra.mxu0 0
        %613 = vmatprep.subr.bf16.mxu0 0
        %614 = vmatpush1.bf16.msra.mxu0 0
        %615 = vmatprep.subr.bf16.mxu0 %v607
        %616 = vmatpush1.bf16.msra.mxu0 %v604
        %617 = vmatprep.subr.bf16.mxu0 %v597
        %618 = vmatpush1.bf16.msra.mxu0 %v596
        %619 = vmatprep.subr.bf16.mxu0 %v595
        %620 = vmatpush1.bf16.msra.mxu0 %v594
        %621 = vmatprep.subr.bf16.mxu0 %v593
        %622 = vmatpush1.bf16.msra.mxu0 %v592
        %623 = vmatprep.subr.bf16.mxu0 %v591
        %624 = vmatpush1.bf16.msra.mxu0 %v590
        %625 = vmatprep.subr.bf16.mxu0 0
        %626 = vmatpush2.bf16.msra.mxu0 0
        %627 = vmatprep.subr.bf16.mxu0 0
        %628 = vmatpush2.bf16.msra.mxu0 0
        %629 = vmatprep.subr.bf16.mxu0 0
        %630 = vmatpush2.bf16.msra.mxu0 0
        %631 = vmatprep.subr.bf16.mxu0 0
        %632 = vmatpush2.bf16.msra.mxu0 0
        %633 = vmatprep.subr.bf16.mxu0 0
        %634 = vmatpush2.bf16.msra.mxu0 0
        %635 = vmatprep.subr.bf16.mxu0 0
        %636 = vmatpush2.bf16.msra.mxu0 0
        %637 = vmatprep.subr.bf16.mxu0 0
        %638 = vmatpush2.bf16.msra.mxu0 0
        %639 = vmatprep.subr.bf16.mxu0 0
        %640 = vmatpush2.bf16.msra.mxu0 0
        %641 = vmatprep.mubr.bf16.mxu0 0
        %642 = vmatmul.mubr.bf16.gmra.mxu0 %v601
        %v643 = vpop.f32.mrf.mxu0
        %v644 = vadd.f32 0.0, %v643
        %v645 = vpop.f32.mrf.mxu0
        %v646 = vadd.f32 0.0, %v645
        %v647 = vpop.f32.mrf.mxu0
        %v648 = vpop.f32.mrf.mxu0
        %649 = vdwg.mxu0
        %v650 = vadd.f32 %v644, %v646
        %651 = vadd.xlane.f32.xlu0 %v650
        %v652 = vpop.xlane.xlu0 %651
        %v653 = vmul.f32 %v652, 0.00390625
        %v654 = vmul.f32 %v644, %v644
        %v655 = vmul.f32 %v646, %v646
        %v656 = vadd.f32 %v654, %v655
        %657 = vadd.xlane.f32.xlu0 %v656
        %v658 = vpop.xlane.xlu0 %657
        %v659 = vmul.f32 %v658, 0.00390625
        %v660 = vmul.f32 %v653, %v653
        %v661 = vsub.f32 %v659, %v660
        %v662 = vsub.f32 %v644, %v653
        %v663 = vsub.f32 %v646, %v653
        %v664 = vadd.f32 %v661, 1e-05
        %v665 = vrsqrt.pop %v664
        %v666 = vmul.f32 %v662, %v665
        %v667 = vmul.f32 %v663, %v665
        %v668 = vadd.f32 %v277, %v666
        %v669 = vadd.f32 %v278, %v667
        %670 = vst [vmem:[#allocation2] sm:$0xff] %v668
        %671 = vst [vmem:[#allocation2 + $0x8] sm:$0xff] %v669
        %p672 = scmp.eq.s32.totalorder %s28, 1
        // Predicated region
        $region49: #{tpu_custom_call.1} parent=31 // pred_check
          %p673 = pneg %p672
        $region50: #{tpu_custom_call.1} parent=31 // pred_check_branch
          %675 = sbr.rel (%p673) target = $region52
        $region51: #{tpu_custom_call.1} parent=31 // pred_region
          %v676 = vld [vmem:[#allocation2] sm:$0xf]
          %v677 = vld [vmem:[#allocation2 + $0x8] sm:$0xf]
          %v680 = vcombine.low %v676, %v677
          %682 = vst [vmem:[%s252] sm:$0xff] %v680
        $region52: #{tpu_custom_call.1} parent=31 // pred_fallthru
          _
        %s683 = sand.u32 %s116, 1
        %s684 = scalar_lea.sflag [#allocation5], %s683
        %s685 = sand.u32 %s116, 1
        %s686 = smul.addr %s685, 8
        %s687 = scalar_lea.vmem [#allocation9], %s686
        // Predicated region
        $region53: #{tpu_custom_call.1} parent=31 // pred_check
          %p688 = pneg %p126
        $region54: #{tpu_custom_call.1} parent=31 // pred_check_branch
          %690 = sbr.rel (%p688) target = $region56
        $region55: #{tpu_custom_call.1} parent=31 // pred_region
          %s692 = ssub.s32 128, 128
          %693 = vsyncadd %s684, %s692
          %s694 = smul.addr %s27, 2
          %s695 = smul.addr %s694, 64
          %s696 = scalar_lea.hbm %s3, %s695
          %s698 = sshll.u32 %s687, 4
          %s699 = int_to_ptr.vmem [resolvable:$true] %s698
          %701 = dma.vmem_to_hbm [thread:$0]  %s699, 128, %s696, %s684
        $region56: #{tpu_custom_call.1} parent=31 // pred_fallthru
          _
      $region32: #{tpu_custom_call.1} parent=5 // pred_fallthru
        _
      %p702 = scmp.le.s32.totalorder 2, %s18
      // Predicated region
      $region57: #{tpu_custom_call.1} parent=5 // pred_check
        %p703 = pneg %p702
      $region58: #{tpu_custom_call.1} parent=5 // pred_check_branch
        %705 = sbr.rel (%p703) target = $region60
      $region59: #{tpu_custom_call.1} parent=5 // pred_region
        %s706 = ssub.s32 %s18, 2
        // Predicated region
        $region61: #{tpu_custom_call.1} parent=59 // pred_check
          %p707 = pneg %p132
        $region62: #{tpu_custom_call.1} parent=59 // pred_check_branch
          %709 = sbr.rel (%p707) target = $region64
        $region63: #{tpu_custom_call.1} parent=59 // pred_region
          %s710 = sand.u32 %s117, 1
          %s711 = scalar_lea.sflag [#allocation5], %s710
          %s712 = sand.u32 %s117, 1
          %s713 = smul.addr %s712, 8
          %s714 = scalar_lea.vmem [#allocation9], %s713
          %715 = dma.done %s711, 128
        $region64: #{tpu_custom_call.1} parent=59 // pred_fallthru
          _
      $region60: #{tpu_custom_call.1} parent=5 // pred_fallthru
        _
    $region6: #{tpu_custom_call.1} parent=1 // loop_footer
      %s22 = sadd.s32 1, %s18
    $region7: #{tpu_custom_call.1} parent=1 // loop_footer_branch
      %17 = sbr.rel target = $region3
    $region8: #{tpu_custom_call.1} parent=1 // loop_exit
      _
    %716 = vsyncpa [#allocation4], 1
    %s717 = scalar_lea.sflag [#allocation4], 1
    %718 = vsyncpa %s717, 1
    %719 = vsyncpa [#allocation7], 1
    %s720 = scalar_lea.sflag [#allocation7], 1
    %721 = vsyncpa %s720, 1
    %722 = vsyncpa [#allocation5], 1
    %s723 = scalar_lea.sflag [#allocation5], 1
    %724 = vsyncpa %s723, 1

</llo_original>
